<compile_context>
chip_gen: v5e
topology: v5e:2x2
jax: 0.10.0
libtpu: 0.0.40
codegen_flags: <defaults>
</compile_context>

<pallas_src>
import functools
import math

import jax
import jax.numpy as jnp
from jax import lax
from jax.experimental import pallas as pl
from jax.experimental.pallas import tpu as pltpu

_LANE = 128
_NEG_INF = -1e30


def _round_up(x, m):
    return ((x + m - 1) // m) * m


def _vmem_capacity_bytes():
    """Best-effort per-core VMEM capacity; conservative (v7x, 64 MiB) fallback."""
    try:
        info = pltpu.get_tpu_info()
        for attr in ("vmem_capacity_bytes", "vmem_size_bytes", "vmem_bytes"):
            val = getattr(info, attr, None)
            if val:
                return int(val)
    except Exception:
        pass
    return 64 * 1024 * 1024


def _choose_tiles(seq, vmem_cap):
    """Score tile is [tq, tk]; tq on sublanes (mult of 8), tk on lanes (mult of 128)."""
    if seq <= 256:
        t = min(max(_LANE, _round_up(seq, _LANE)), 256)
        return t, t
    if vmem_cap >= 96 * 1024 * 1024:
        # 128-MiB parts (v5e/v6e): bigger q tile halves K/V re-stream traffic
        # in the streaming path and amortizes per-grid-step overhead.
        tq, tk = 512, 512
    else:
        # v7x (64 MiB): 256-multiples still fill the 2x256^2 MXU.
        tq, tk = 256, 512
    # Keep >=2 query tiles so the "parallel" axis can shard across v7x's 2 TCs.
    while tq > 256 and _round_up(seq, max(tq, tk)) // tq < 2:
        tq //= 2
    assert tk % tq == 0 and tk >= tq  # also guarantees boundary kv tile has real keys
    return tq, tk


def qkv_proj_kernel(x_ref, w_ref, qkv_ref, acc_ref):
    """Fused Q|K|V projection: bf16 MXU operands, f32 accumulation over d_in tiles."""
    @pl.when(pl.program_id(1) == 0)
    def _init():
        acc_ref[...] = jnp.zeros_like(acc_ref)

    acc_ref[...] += jnp.dot(x_ref[...], w_ref[...],
                            preferred_element_type=jnp.float32)

    @pl.when(pl.program_id(1) == pl.num_programs(1) - 1)
    def _store():
        qkv_ref[...] = acc_ref[...].astype(qkv_ref.dtype)


def flash_attn_kernel(q_ref, k_ref, v_ref, o_ref, m_scr, l_scr, acc_scr,
                      *, seq_len, tk, kv_resident, needs_mask):
    kv = pl.program_id(1)

    @pl.when(kv == 0)
    def _init():
        m_scr[...] = jnp.full(m_scr.shape, _NEG_INF, jnp.float32)
        l_scr[...] = jnp.zeros(l_scr.shape, jnp.float32)
        acc_scr[...] = jnp.zeros(acc_scr.shape, jnp.float32)

    # q already carries the 1/sqrt(d_out) scale (folded into W_query in f32).
    q = q_ref[...]                                     # bf16 [tq, dp]
    if kv_resident:
        # K/V live fully in VMEM; slice the current kv chunk (no HBM traffic).
        start = pl.multiple_of(kv * tk, tk)
        k = k_ref[pl.ds(start, tk), :]                 # bf16 [tk, dp]
        v = v_ref[pl.ds(start, tk), :]                 # bf16 [tk, dp]
    else:
        k = k_ref[...]
        v = v_ref[...]

    # scores[i, j] = sum_d q[i, d] * k[j, d] — bf16 operands, f32 MXU accumulate,
    # contract last dims (no k.T transpose/copy).
    s = lax.dot_general(q, k, (((1,), (1,)), ((), ())),
                        preferred_element_type=jnp.float32)   # f32 [tq, tk]

    if needs_mask:
        # Mask key positions that are sequence padding (global index >= seq_len).
        col = kv * tk + lax.broadcasted_iota(jnp.int32, s.shape, 1)
        s = jnp.where(col < seq_len, s, _NEG_INF)

    m_prev = m_scr[...]
    m_new = jnp.maximum(m_prev, jnp.max(s, axis=-1, keepdims=True))
    alpha = jnp.exp(m_prev - m_new)
    p = jnp.exp(s - m_new)                                     # f32
    l_scr[...] = alpha * l_scr[...] + jnp.sum(p, axis=-1, keepdims=True)
    acc_scr[...] = alpha * acc_scr[...] + jnp.dot(
        p.astype(jnp.bfloat16), v, preferred_element_type=jnp.float32)
    m_scr[...] = m_new

    @pl.when(kv == pl.num_programs(1) - 1)
    def _finalize():
        inv_l = pl.reciprocal(l_scr[...], approx=True)   # EUP slot, ~free
        o_ref[...] = (acc_scr[...] * inv_l).astype(o_ref.dtype)


def self_attention_v2(x, w_query, w_key, w_value, *, force_kv_streaming=False):
    """x: [seq, d_in]; w_*: [d_in, d_out] -> context vectors [seq, d_out] (f32)."""
    seq, d_in = x.shape
    d_out = w_query.shape[1]
    scale = 1.0 / math.sqrt(d_out)                 # matches keys.shape[-1] ** 0.5

    dp = _round_up(d_out, _LANE)                   # lane-dense head dim
    din_p = _round_up(d_in, _LANE)                 # lane-dense contraction dim

    vmem_cap = _vmem_capacity_bytes()
    # Generation-aware compiler VMEM budget: ~96 MiB on 128-MiB parts (v5e/v6e),
    # ~48 MiB on v7x (headroom under the 64-MiB physical ceiling).
    vmem_limit = int(min(vmem_cap * 3 // 4, 100 * 1024 * 1024))

    tq, tk = _choose_tiles(seq, vmem_cap)
    s_pad = _round_up(seq, tk)                     # tk >= tq and tk % tq == 0
    n_q, n_kv = s_pad // tq, s_pad // tk
    needs_mask = s_pad != seq

    # ---- Operand assembly (bf16): skip padding copies when already aligned. ----
    if seq == s_pad and d_in == din_p:
        x_p = x.astype(jnp.bfloat16)
    else:
        x_p = jnp.zeros((s_pad, din_p), jnp.bfloat16)
        x_p = x_p.at[:seq, :d_in].set(x.astype(jnp.bfloat16))

    # Fused weights; softmax scale folded into W_query IN F32 before the bf16 cast.
    w_qkv = jnp.zeros((din_p, 3 * dp), jnp.float32)
    w_qkv = w_qkv.at[:d_in, 0 * dp:0 * dp + d_out].set(w_query * scale)
    w_qkv = w_qkv.at[:d_in, 1 * dp:1 * dp + d_out].set(w_key)
    w_qkv = w_qkv.at[:d_in, 2 * dp:2 * dp + d_out].set(w_value)
    w_qkv = w_qkv.astype(jnp.bfloat16)

    # ---- Kernel 1: fused QKV projection, tiled over seq and d_in. ----
    dk = din_p
    if din_p > 1024:                               # keep kernel-1 VMEM bounded (v7x)
        for cand in (512, 256, 128):
            if din_p % cand == 0:
                dk = cand
                break
    n_dk = din_p // dk

    qkv = pl.pallas_call(
        qkv_proj_kernel,
        out_shape=jax.ShapeDtypeStruct((s_pad, 3 * dp), jnp.bfloat16),
        grid=(n_q, n_dk),
        in_specs=[
            pl.BlockSpec((tq, dk), lambda i, k: (i, k)),
            pl.BlockSpec((dk, 3 * dp), lambda i, k: (k, 0)),
        ],
        out_specs=pl.BlockSpec((tq, 3 * dp), lambda i, k: (i, 0)),
        scratch_shapes=[pltpu.VMEM((tq, 3 * dp), jnp.float32)],
        compiler_params=pltpu.CompilerParams(
            dimension_semantics=("parallel", "arbitrary"),
            vmem_limit_bytes=vmem_limit),
    )(x_p, w_qkv)

    # ---- Kernel 2: flash attention over a (query_tile, kv_tile) grid. ----
    # Resident-K/V path when the full bf16 K+V (with possible double-buffering of
    # constant-index blocks) fits comfortably inside the VMEM budget; otherwise
    # stream (tk, dp) tiles from HBM per step.
    kv_resident_bytes = 2 * 2 * s_pad * dp * 2     # K+V, x2 buffers, bf16
    kv_resident = (not force_kv_streaming) and (kv_resident_bytes <= vmem_limit // 2)

    q_spec = pl.BlockSpec((tq, dp), lambda i, j: (i, 0))
    if kv_resident:
        k_spec = pl.BlockSpec((s_pad, dp), lambda i, j: (0, 1))   # fetched once
        v_spec = pl.BlockSpec((s_pad, dp), lambda i, j: (0, 2))
        kv_hbm_reads = 2 * s_pad * dp * 2
    else:
        k_spec = pl.BlockSpec((tk, dp), lambda i, j: (j, 1))
        v_spec = pl.BlockSpec((tk, dp), lambda i, j: (j, 2))
        kv_hbm_reads = n_q * 2 * s_pad * dp * 2    # K/V re-streamed per query tile

    cost = pl.CostEstimate(
        flops=4 * s_pad * s_pad * dp,                       # QK^T + PV
        transcendentals=s_pad * s_pad + s_pad,              # exp + reciprocal
        bytes_accessed=s_pad * dp * 2 + kv_hbm_reads + s_pad * dp * 4,
    )

    out_p = pl.pallas_call(
        functools.partial(flash_attn_kernel, seq_len=seq, tk=tk,
                          kv_resident=kv_resident, needs_mask=needs_mask),
        out_shape=jax.ShapeDtypeStruct((s_pad, dp), jnp.float32),
        grid=(n_q, n_kv),
        in_specs=[q_spec, k_spec, v_spec],
        out_specs=pl.BlockSpec((tq, dp), lambda i, j: (i, 0)),
        scratch_shapes=[
            pltpu.VMEM((tq, 1), jnp.float32),    # running max  m
            pltpu.VMEM((tq, 1), jnp.float32),    # running sum  l
            pltpu.VMEM((tq, dp), jnp.float32),   # output accumulator
        ],
        compiler_params=pltpu.CompilerParams(
            dimension_semantics=("parallel", "arbitrary"),
            vmem_limit_bytes=vmem_limit),
        cost_estimate=cost,
    )(qkv, qkv, qkv)

    return out_p[:seq, :d_out]


def init_linear_weight(key, d_in, d_out):
    """nn.Linear-style init U(-1/sqrt(d_in), 1/sqrt(d_in)), stored [d_in, d_out]."""
    bound = 1.0 / math.sqrt(d_in)
    return jax.random.uniform(key, (d_in, d_out), jnp.float32,
                              minval=-bound, maxval=bound)


def _reference(x, wq, wk, wv):
    q, k, v = x @ wq, x @ wk, x @ wv
    w = jax.nn.softmax((q @ k.T) / math.sqrt(wq.shape[1]), axis=-1)
    return w @ v


def _check(out, ref, name):
    # bf16 MXU operands / bf16 qkv intermediate (per perf review) plus the EUP
    # approx reciprocal give ~1% relative error vs the pure-f32 reference.
    assert jnp.allclose(out, ref, atol=2e-2, rtol=2e-2), f"mismatch vs reference ({name})"


if __name__ == "__main__":
    # Toy case from the reference script: 6 tokens, d_in=3, d_out=2.
    inputs = jnp.array(
        [
            [0.43, 0.15, 0.89],
            [0.55, 0.87, 0.66],
            [0.57, 0.85, 0.64],
            [0.22, 0.58, 0.33],
            [0.77, 0.25, 0.10],
            [0.05, 0.80, 0.55],
        ],
        dtype=jnp.float32,
    )
    d_in, d_out = inputs.shape[1], 2

    key = jax.random.PRNGKey(0)
    kq, kk, kv_, k_rest = jax.random.split(key, 4)
    w_query = init_linear_weight(kq, d_in, d_out)
    w_key = init_linear_weight(kk, d_in, d_out)
    w_value = init_linear_weight(kv_, d_in, d_out)

    out = jax.block_until_ready(self_attention_v2(inputs, w_query, w_key, w_value))
    _check(out, _reference(inputs, w_query, w_key, w_value), "toy")

    # Padded-seq case (seq=200 -> 256): exercises key-padding mask + resident K/V.
    seq2, din2, dout2 = 200, 16, 32
    kx, kq2, kk2, kv2, k_rest = jax.random.split(k_rest, 5)
    x2 = jax.random.normal(kx, (seq2, din2), jnp.float32)
    wq2 = init_linear_weight(kq2, din2, dout2)
    wk2 = init_linear_weight(kk2, din2, dout2)
    wv2 = init_linear_weight(kv2, din2, dout2)
    out2 = jax.block_until_ready(self_attention_v2(x2, wq2, wk2, wv2))
    _check(out2, _reference(x2, wq2, wk2, wv2), "padded")

    # Multi-tile case (seq=640): multiple q/kv tiles, online-softmax accumulation
    # across kv steps; run both the resident-K/V path and the streaming fallback.
    seq3, din3, dout3 = 640, 48, 64
    kx3, kq3, kk3, kv3 = jax.random.split(k_rest, 4)
    x3 = jax.random.normal(kx3, (seq3, din3), jnp.float32)
    wq3 = init_linear_weight(kq3, din3, dout3)
    wk3 = init_linear_weight(kk3, din3, dout3)
    wv3 = init_linear_weight(kv3, din3, dout3)
    ref3 = _reference(x3, wq3, wk3, wv3)

    out3_res = jax.block_until_ready(self_attention_v2(x3, wq3, wk3, wv3))
    _check(out3_res, ref3, "multi-tile resident")

    out3_str = jax.block_until_ready(
        self_attention_v2(x3, wq3, wk3, wv3, force_kv_streaming=True))
    _check(out3_str, ref3, "multi-tile streaming")
    assert jnp.allclose(out3_res, out3_str, atol=1e-5, rtol=1e-5), \
        "resident vs streaming path mismatch"

    print("KERNEL_OK")
</pallas_src>

<mosaic_0001>
module attributes {stable_mosaic.version = 11 : i64} {
  func.func @qkv_proj_kernel(%arg0: i32, %arg1: i32, %arg2: memref<128x128xbf16, #tpu.memory_space<vmem>>, %arg3: memref<128x384xbf16, #tpu.memory_space<vmem>>, %arg4: memref<128x384xbf16, #tpu.memory_space<vmem>>, %arg5: memref<128x384xf32, #tpu.memory_space<vmem>>) attributes {dimension_semantics = [#tpu.dimension_semantics<parallel>, #tpu.dimension_semantics<arbitrary>], iteration_bounds = array<i64: 1, 1>, scalar_prefetch = 0 : i64, scratch_operands = 1 : i64, tpu.core_type = #tpu.core_type<tc>, window_params = [{transform_indices = @transform_0, window_bounds = array<i64: 128, 128>}, {transform_indices = @transform_1, window_bounds = array<i64: 128, 384>}, {transform_indices = @transform_2, window_bounds = array<i64: 128, 384>}]} {
    %c0_i32 = arith.constant 0 : i32
    %0 = arith.cmpi eq, %arg1, %c0_i32 : i32
    %1 = arith.extui %0 : i1 to i32
    %c0_i32_0 = arith.constant 0 : i32
    %2 = arith.cmpi ne, %1, %c0_i32_0 : i32
    scf.if %2 {
      %cst_10 = arith.constant 0.000000e+00 : f32
      %12 = vector.broadcast %cst_10 : f32 to vector<128x384xf32>
      %c0_11 = arith.constant 0 : index
      %c0_12 = arith.constant 0 : index
      %13 = vector.load %arg5[%c0_11, %c0_12] : memref<128x384xf32, #tpu.memory_space<vmem>>, vector<128x384xf32>
      tpu.vector_store %arg5[%c0_11, %c0_12], %12 {strides = array<i32>} : memref<128x384xf32, #tpu.memory_space<vmem>>, vector<128x384xf32>,
    } else {
    }
    %c0 = arith.constant 0 : index
    %c0_1 = arith.constant 0 : index
    %3 = vector.load %arg5[%c0, %c0_1] : memref<128x384xf32, #tpu.memory_space<vmem>>, vector<128x384xf32>
    %c0_2 = arith.constant 0 : index
    %c0_3 = arith.constant 0 : index
    %4 = vector.load %arg2[%c0_2, %c0_3] : memref<128x128xbf16, #tpu.memory_space<vmem>>, vector<128x128xbf16>
    %c0_4 = arith.constant 0 : index
    %c0_5 = arith.constant 0 : index
    %5 = vector.load %arg3[%c0_4, %c0_5] : memref<128x384xbf16, #tpu.memory_space<vmem>>, vector<128x384xbf16>
    %cst = arith.constant dense<0.000000e+00> : vector<128x384xf32>
    %6 = tpu.matmul %4, %5, %cst {dimension_numbers = #tpu.dot_dimension_numbers<[1], [0], [0], [1], [0, 0, 1, 1], [], []>} : vector<128x128xbf16>, vector<128x384xbf16>, vector<128x384xf32> -> vector<128x384xf32>
    %7 = arith.addf %3, %6 : vector<128x384xf32>
    %c0_6 = arith.constant 0 : index
    %c0_7 = arith.constant 0 : index
    %8 = vector.load %arg5[%c0_6, %c0_7] : memref<128x384xf32, #tpu.memory_space<vmem>>, vector<128x384xf32>
    tpu.vector_store %arg5[%c0_6, %c0_7], %7 {strides = array<i32>} : memref<128x384xf32, #tpu.memory_space<vmem>>, vector<128x384xf32>,
    %c0_i32_8 = arith.constant 0 : i32
    %9 = arith.cmpi eq, %arg1, %c0_i32_8 : i32
    %10 = arith.extui %9 : i1 to i32
    %c0_i32_9 = arith.constant 0 : i32
    %11 = arith.cmpi ne, %10, %c0_i32_9 : i32
    scf.if %11 {
      %c0_10 = arith.constant 0 : index
      %c0_11 = arith.constant 0 : index
      %12 = vector.load %arg5[%c0_10, %c0_11] : memref<128x384xf32, #tpu.memory_space<vmem>>, vector<128x384xf32>
      %13 = arith.truncf %12 : vector<128x384xf32> to vector<128x384xbf16>
      %c0_12 = arith.constant 0 : index
      %c0_13 = arith.constant 0 : index
      %14 = vector.load %arg4[%c0_12, %c0_13] : memref<128x384xbf16, #tpu.memory_space<vmem>>, vector<128x384xbf16>
      tpu.vector_store %arg4[%c0_12, %c0_13], %13 {strides = array<i32>} : memref<128x384xbf16, #tpu.memory_space<vmem>>, vector<128x384xbf16>,
    } else {
    }
    return
  }
  func.func @transform_0(%arg0: i32, %arg1: i32) -> (i32, i32) {
    %c0_i32 = arith.constant 0 : i32
    return %arg0, %arg1 : i32, i32
  }
  func.func @transform_1(%arg0: i32, %arg1: i32) -> (i32, i32) {
    %c0_i32 = arith.constant 0 : i32
    %c0_i32_0 = arith.constant 0 : i32
    return %arg1, %c0_i32 : i32, i32
  }
  func.func @transform_2(%arg0: i32, %arg1: i32) -> (i32, i32) {
    %c0_i32 = arith.constant 0 : i32
    %c0_i32_0 = arith.constant 0 : i32
    return %arg0, %c0_i32 : i32, i32
  }
}

</mosaic_0001>

<llo_original>
// kernel: tpu_custom_call.1
$region0: #{tpu_custom_call.1}
  #allocation0 [shape = 'u32[]', space=smem, size = 0x4, offset = 0x4, fixed_abs, tag = 'smem constant byte address 0x4 - core index']
  #allocation1 [shape = 'u32[72,128]{1,0:T(1,128)}', space=vmem, size = 0x9000, scoped, tag = 'internal scratch']
  #allocation2 [shape = 'f32[128,384]{1,0:T(8,128)}', space=vmem, size = 0x30000, scoped, tag = 'scratch operand']
  %s0 = inlined_call_operand.hbm [shape: bf16[128,128], index: 0, kind: input, shape index: {}]
  %s1 = inlined_call_operand.hbm [shape: bf16[128,384], index: 1, kind: input, shape index: {}]
  %s2 = inlined_call_operand.hbm [shape: bf16[128,384], index: 2, kind: output, shape index: {}]
  %s3 = sld [smem:[#allocation0]]
  $region34: #{tpu_custom_call.1} parent=0
    _
  %s5 = ssub.s32 1, %s3
  %s6 = scalar_select 0, %s5, %s3
  $region1: #{tpu_custom_call.1} parent=0
    #allocation3 [shape = 'u8[32768]{0}', space=vmem, size = 0x8000, scoped, tag = 'input window, operand 0, single buffered']
    #allocation4 [shape = 's32[1]{0}', space=sflag, size = 0x4, scoped, tag = 'scoped memory for tpu_custom_call.1']
    #allocation5 [shape = 's32[1]{0}', space=sflag, size = 0x4, scoped, tag = 'scoped memory for tpu_custom_call.1']
    #allocation6 [shape = 'u8[98304]{0}', space=vmem, size = 0x18000, scoped, tag = 'input window, operand 1, single buffered']
    #allocation7 [shape = 's32[1]{0}', space=sflag, size = 0x4, scoped, tag = 'scoped memory for tpu_custom_call.1']
    #allocation8 [shape = 'u8[98304]{0}', space=vmem, size = 0x18000, scoped, tag = 'output window, operand 0, single buffered']
    %7 = vsyncpa [#allocation4], 0
    %8 = vsyncpa [#allocation7], 0
    %9 = vsyncpa [#allocation5], 0
    // Predicated region
    $region2: #{tpu_custom_call.1} parent=1 // pred_check
      _
    $region3: #{tpu_custom_call.1} parent=1 // pred_check_branch
      %11 = sbr.rel (0) target = $region5
    $region4: #{tpu_custom_call.1} parent=1 // pred_region
      %13 = vsyncadd [#allocation4], 0
      %s14 = sshll.u32 %s0, 4
      %s15 = int_to_ptr.hbm [resolvable:$true] %s14
      %s16 = sshll.u32 [#allocation3], 4
      %s17 = int_to_ptr.vmem [resolvable:$true] %s16
      %22 = dma.hbm_to_vmem [thread:$0]  %s15, 1024, %s17, [#allocation4], 64, 64, 4
    $region5: #{tpu_custom_call.1} parent=1 // pred_fallthru
      _
    // Predicated region
    $region6: #{tpu_custom_call.1} parent=1 // pred_check
      _
    $region7: #{tpu_custom_call.1} parent=1 // pred_check_branch
      %24 = sbr.rel (0) target = $region9
    $region8: #{tpu_custom_call.1} parent=1 // pred_region
      %26 = vsyncadd [#allocation7], 0
      %s27 = sshll.u32 %s1, 4
      %s28 = int_to_ptr.hbm [resolvable:$true] %s27
      %s29 = sshll.u32 [#allocation6], 4
      %s30 = int_to_ptr.vmem [resolvable:$true] %s29
      %35 = dma.hbm_to_vmem [thread:$0]  %s28, 3072, %s30, [#allocation7], 192, 192, 12
    $region9: #{tpu_custom_call.1} parent=1 // pred_fallthru
      _
    // Predicated region
    $region10: #{tpu_custom_call.1} parent=1 // pred_check
      _
    $region11: #{tpu_custom_call.1} parent=1 // pred_check_branch
      %37 = sbr.rel (0) target = $region13
    $region12: #{tpu_custom_call.1} parent=1 // pred_region
      %39 = dma.done [#allocation4], 1024
    $region13: #{tpu_custom_call.1} parent=1 // pred_fallthru
      _
    // Predicated region
    $region14: #{tpu_custom_call.1} parent=1 // pred_check
      _
    $region15: #{tpu_custom_call.1} parent=1 // pred_check_branch
      %41 = sbr.rel (0) target = $region17
    $region16: #{tpu_custom_call.1} parent=1 // pred_region
      %43 = dma.done [#allocation7], 3072
    $region17: #{tpu_custom_call.1} parent=1 // pred_fallthru
      _
    %p44 = scmp.eq.s32.totalorder 0, 0
    // Predicated region
    $region18: #{tpu_custom_call.1} parent=1 // pred_check
      %p45 = pneg %p44
    $region19: #{tpu_custom_call.1} parent=1 // pred_check_branch
      %47 = sbr.rel (%p45) target = $region21
    $region20: #{tpu_custom_call.1} parent=1 // pred_region
      %48 = vst [vmem:[#allocation2] sm:$0xff] 0.0
      %49 = vst [vmem:[#allocation2 + $0x8] sm:$0xff] 0.0
      %50 = vst [vmem:[#allocation2 + $0x10] sm:$0xff] 0.0
      %51 = vst [vmem:[#allocation2 + $0x18] sm:$0xff] 0.0
      %52 = vst [vmem:[#allocation2 + $0x20] sm:$0xff] 0.0
      %53 = vst [vmem:[#allocation2 + $0x28] sm:$0xff] 0.0
      %54 = vst [vmem:[#allocation2 + $0x30] sm:$0xff] 0.0
      %55 = vst [vmem:[#allocation2 + $0x38] sm:$0xff] 0.0
      %56 = vst [vmem:[#allocation2 + $0x40] sm:$0xff] 0.0
      %57 = vst [vmem:[#allocation2 + $0x48] sm:$0xff] 0.0
      %58 = vst [vmem:[#allocation2 + $0x50] sm:$0xff] 0.0
      %59 = vst [vmem:[#allocation2 + $0x58] sm:$0xff] 0.0
      %60 = vst [vmem:[#allocation2 + $0x60] sm:$0xff] 0.0
      %61 = vst [vmem:[#allocation2 + $0x68] sm:$0xff] 0.0
      %62 = vst [vmem:[#allocation2 + $0x70] sm:$0xff] 0.0
      %63 = vst [vmem:[#allocation2 + $0x78] sm:$0xff] 0.0
      %64 = vst [vmem:[#allocation2 + $0x80] sm:$0xff] 0.0
      %65 = vst [vmem:[#allocation2 + $0x88] sm:$0xff] 0.0
      %66 = vst [vmem:[#allocation2 + $0x90] sm:$0xff] 0.0
      %67 = vst [vmem:[#allocation2 + $0x98] sm:$0xff] 0.0
      %68 = vst [vmem:[#allocation2 + $0xa0] sm:$0xff] 0.0
      %69 = vst [vmem:[#allocation2 + $0xa8] sm:$0xff] 0.0
      %70 = vst [vmem:[#allocation2 + $0xb0] sm:$0xff] 0.0
      %71 = vst [vmem:[#allocation2 + $0xb8] sm:$0xff] 0.0
      %72 = vst [vmem:[#allocation2 + $0xc0] sm:$0xff] 0.0
      %73 = vst [vmem:[#allocation2 + $0xc8] sm:$0xff] 0.0
      %74 = vst [vmem:[#allocation2 + $0xd0] sm:$0xff] 0.0
      %75 = vst [vmem:[#allocation2 + $0xd8] sm:$0xff] 0.0
      %76 = vst [vmem:[#allocation2 + $0xe0] sm:$0xff] 0.0
      %77 = vst [vmem:[#allocation2 + $0xe8] sm:$0xff] 0.0
      %78 = vst [vmem:[#allocation2 + $0xf0] sm:$0xff] 0.0
      %79 = vst [vmem:[#allocation2 + $0xf8] sm:$0xff] 0.0
      %80 = vst [vmem:[#allocation2 + $0x100] sm:$0xff] 0.0
      %81 = vst [vmem:[#allocation2 + $0x108] sm:$0xff] 0.0
      %82 = vst [vmem:[#allocation2 + $0x110] sm:$0xff] 0.0
      %83 = vst [vmem:[#allocation2 + $0x118] sm:$0xff] 0.0
      %84 = vst [vmem:[#allocation2 + $0x120] sm:$0xff] 0.0
      %85 = vst [vmem:[#allocation2 + $0x128] sm:$0xff] 0.0
      %86 = vst [vmem:[#allocation2 + $0x130] sm:$0xff] 0.0
      %87 = vst [vmem:[#allocation2 + $0x138] sm:$0xff] 0.0
      %88 = vst [vmem:[#allocation2 + $0x140] sm:$0xff] 0.0
      %89 = vst [vmem:[#allocation2 + $0x148] sm:$0xff] 0.0
      %90 = vst [vmem:[#allocation2 + $0x150] sm:$0xff] 0.0
      %91 = vst [vmem:[#allocation2 + $0x158] sm:$0xff] 0.0
      %92 = vst [vmem:[#allocation2 + $0x160] sm:$0xff] 0.0
      %93 = vst [vmem:[#allocation2 + $0x168] sm:$0xff] 0.0
      %94 = vst [vmem:[#allocation2 + $0x170] sm:$0xff] 0.0
      %95 = vst [vmem:[#allocation2 + $0x178] sm:$0xff] 0.0
    $region21: #{tpu_custom_call.1} parent=1 // pred_fallthru
      _
    %v96 = vld [vmem:[#allocation2] sm:$0xff]
    %v97 = vld [vmem:[#allocation2 + $0x8] sm:$0xff]
    %v98 = vld [vmem:[#allocation2 + $0x10] sm:$0xff]
    %v99 = vld [vmem:[#allocation2 + $0x18] sm:$0xff]
    %v100 = vld [vmem:[#allocation2 + $0x20] sm:$0xff]
    %v101 = vld [vmem:[#allocation2 + $0x28] sm:$0xff]
    %v102 = vld [vmem:[#allocation2 + $0x30] sm:$0xff]
    %v103 = vld [vmem:[#allocation2 + $0x38] sm:$0xff]
    %v104 = vld [vmem:[#allocation2 + $0x40] sm:$0xff]
    %v105 = vld [vmem:[#allocation2 + $0x48] sm:$0xff]
    %v106 = vld [vmem:[#allocation2 + $0x50] sm:$0xff]
    %v107 = vld [vmem:[#allocation2 + $0x58] sm:$0xff]
    %v108 = vld [vmem:[#allocation2 + $0x60] sm:$0xff]
    %v109 = vld [vmem:[#allocation2 + $0x68] sm:$0xff]
    %v110 = vld [vmem:[#allocation2 + $0x70] sm:$0xff]
    %v111 = vld [vmem:[#allocation2 + $0x78] sm:$0xff]
    %v112 = vld [vmem:[#allocation2 + $0x80] sm:$0xff]
    %v113 = vld [vmem:[#allocation2 + $0x88] sm:$0xff]
    %v114 = vld [vmem:[#allocation2 + $0x90] sm:$0xff]
    %v115 = vld [vmem:[#allocation2 + $0x98] sm:$0xff]
    %v116 = vld [vmem:[#allocation2 + $0xa0] sm:$0xff]
    %v117 = vld [vmem:[#allocation2 + $0xa8] sm:$0xff]
    %v118 = vld [vmem:[#allocation2 + $0xb0] sm:$0xff]
    %v119 = vld [vmem:[#allocation2 + $0xb8] sm:$0xff]
    %v120 = vld [vmem:[#allocation2 + $0xc0] sm:$0xff]
    %v121 = vld [vmem:[#allocation2 + $0xc8] sm:$0xff]
    %v122 = vld [vmem:[#allocation2 + $0xd0] sm:$0xff]
    %v123 = vld [vmem:[#allocation2 + $0xd8] sm:$0xff]
    %v124 = vld [vmem:[#allocation2 + $0xe0] sm:$0xff]
    %v125 = vld [vmem:[#allocation2 + $0xe8] sm:$0xff]
    %v126 = vld [vmem:[#allocation2 + $0xf0] sm:$0xff]
    %v127 = vld [vmem:[#allocation2 + $0xf8] sm:$0xff]
    %v128 = vld [vmem:[#allocation2 + $0x100] sm:$0xff]
    %v129 = vld [vmem:[#allocation2 + $0x108] sm:$0xff]
    %v130 = vld [vmem:[#allocation2 + $0x110] sm:$0xff]
    %v131 = vld [vmem:[#allocation2 + $0x118] sm:$0xff]
    %v132 = vld [vmem:[#allocation2 + $0x120] sm:$0xff]
    %v133 = vld [vmem:[#allocation2 + $0x128] sm:$0xff]
    %v134 = vld [vmem:[#allocation2 + $0x130] sm:$0xff]
    %v135 = vld [vmem:[#allocation2 + $0x138] sm:$0xff]
    %v136 = vld [vmem:[#allocation2 + $0x140] sm:$0xff]
    %v137 = vld [vmem:[#allocation2 + $0x148] sm:$0xff]
    %v138 = vld [vmem:[#allocation2 + $0x150] sm:$0xff]
    %v139 = vld [vmem:[#allocation2 + $0x158] sm:$0xff]
    %v140 = vld [vmem:[#allocation2 + $0x160] sm:$0xff]
    %v141 = vld [vmem:[#allocation2 + $0x168] sm:$0xff]
    %v142 = vld [vmem:[#allocation2 + $0x170] sm:$0xff]
    %v143 = vld [vmem:[#allocation2 + $0x178] sm:$0xff]
    %v144 = vld [vmem:[#allocation3] sm:$0xf]
    %v145 = vld [vmem:[#allocation3 + $0x4] sm:$0xf]
    %v146 = vld [vmem:[#allocation3 + $0x8] sm:$0xf]
    %v147 = vld [vmem:[#allocation3 + $0xc] sm:$0xf]
    %v148 = vld [vmem:[#allocation3 + $0x10] sm:$0xf]
    %v149 = vld [vmem:[#allocation3 + $0x14] sm:$0xf]
    %v150 = vld [vmem:[#allocation3 + $0x18] sm:$0xf]
    %v151 = vld [vmem:[#allocation3 + $0x1c] sm:$0xf]
    %v152 = vld [vmem:[#allocation3 + $0x20] sm:$0xf]
    %v153 = vld [vmem:[#allocation3 + $0x24] sm:$0xf]
    %v154 = vld [vmem:[#allocation3 + $0x28] sm:$0xf]
    %v155 = vld [vmem:[#allocation3 + $0x2c] sm:$0xf]
    %v156 = vld [vmem:[#allocation3 + $0x30] sm:$0xf]
    %v157 = vld [vmem:[#allocation3 + $0x34] sm:$0xf]
    %v158 = vld [vmem:[#allocation3 + $0x38] sm:$0xf]
    %v159 = vld [vmem:[#allocation3 + $0x3c] sm:$0xf]
    %v160 = vld [vmem:[#allocation6] sm:$0xff]
    %v161 = vld [vmem:[#allocation6 + $0x8] sm:$0xf]
    %v162 = vld [vmem:[#allocation6 + $0xc] sm:$0xff]
    %v163 = vld [vmem:[#allocation6 + $0x14] sm:$0xf]
    %v164 = vld [vmem:[#allocation6 + $0x18] sm:$0xff]
    %v165 = vld [vmem:[#allocation6 + $0x20] sm:$0xf]
    %v166 = vld [vmem:[#allocation6 + $0x24] sm:$0xff]
    %v167 = vld [vmem:[#allocation6 + $0x2c] sm:$0xf]
    %v168 = vld [vmem:[#allocation6 + $0x30] sm:$0xff]
    %v169 = vld [vmem:[#allocation6 + $0x38] sm:$0xf]
    %v170 = vld [vmem:[#allocation6 + $0x3c] sm:$0xff]
    %v171 = vld [vmem:[#allocation6 + $0x44] sm:$0xf]
    %v172 = vld [vmem:[#allocation6 + $0x48] sm:$0xff]
    %v173 = vld [vmem:[#allocation6 + $0x50] sm:$0xf]
    %v174 = vld [vmem:[#allocation6 + $0x54] sm:$0xff]
    %v175 = vld [vmem:[#allocation6 + $0x5c] sm:$0xf]
    %v176 = vld [vmem:[#allocation6 + $0x60] sm:$0xff]
    %v177 = vld [vmem:[#allocation6 + $0x68] sm:$0xf]
    %v178 = vld [vmem:[#allocation6 + $0x6c] sm:$0xff]
    %v179 = vld [vmem:[#allocation6 + $0x74] sm:$0xf]
    %v180 = vld [vmem:[#allocation6 + $0x78] sm:$0xff]
    %v181 = vld [vmem:[#allocation6 + $0x80] sm:$0xf]
    %v182 = vld [vmem:[#allocation6 + $0x84] sm:$0xff]
    %v183 = vld [vmem:[#allocation6 + $0x8c] sm:$0xf]
    %v184 = vld [vmem:[#allocation6 + $0x90] sm:$0xff]
    %v185 = vld [vmem:[#allocation6 + $0x98] sm:$0xf]
    %v186 = vld [vmem:[#allocation6 + $0x9c] sm:$0xff]
    %v187 = vld [vmem:[#allocation6 + $0xa4] sm:$0xf]
    %v188 = vld [vmem:[#allocation6 + $0xa8] sm:$0xff]
    %v189 = vld [vmem:[#allocation6 + $0xb0] sm:$0xf]
    %v190 = vld [vmem:[#allocation6 + $0xb4] sm:$0xff]
    %v191 = vld [vmem:[#allocation6 + $0xbc] sm:$0xf]
    %v208 = vunpack.c.l.b16 %v144
    %v209 = vunpack.c.l.b16 %v145
    %v210 = vunpack.c.l.b16 %v146
    %v211 = vunpack.c.l.b16 %v147
    %v212 = vunpack.c.l.b16 %v148
    %v213 = vunpack.c.l.b16 %v149
    %v214 = vunpack.c.l.b16 %v150
    %v215 = vunpack.c.l.b16 %v151
    %v216 = vunpack.c.l.b16 %v152
    %v217 = vunpack.c.l.b16 %v153
    %v218 = vunpack.c.l.b16 %v154
    %v219 = vunpack.c.l.b16 %v155
    %v220 = vunpack.c.l.b16 %v156
    %v221 = vunpack.c.l.b16 %v157
    %v222 = vunpack.c.l.b16 %v158
    %v223 = vunpack.c.l.b16 %v159
    %v224 = vpack.c.b16 %v209, %v208
    %v225 = vpack.c.b16 %v211, %v210
    %v226 = vpack.c.b16 %v213, %v212
    %v227 = vpack.c.b16 %v215, %v214
    %v228 = vpack.c.b16 %v217, %v216
    %v229 = vpack.c.b16 %v219, %v218
    %v230 = vpack.c.b16 %v221, %v220
    %v231 = vpack.c.b16 %v223, %v222
    %v272 = vunpack.c.l.b16 %v160
    %v273 = vunpack.c.h.b16 %v160
    %v274 = vunpack.c.l.b16 %v161
    %v275 = vunpack.c.l.b16 %v162
    %v276 = vunpack.c.h.b16 %v162
    %v277 = vunpack.c.l.b16 %v163
    %v278 = vunpack.c.l.b16 %v164
    %v279 = vunpack.c.h.b16 %v164
    %v280 = vunpack.c.l.b16 %v165
    %v281 = vunpack.c.l.b16 %v166
    %v282 = vunpack.c.h.b16 %v166
    %v283 = vunpack.c.l.b16 %v167
    %v284 = vunpack.c.l.b16 %v168
    %v285 = vunpack.c.h.b16 %v168
    %v286 = vunpack.c.l.b16 %v169
    %v287 = vunpack.c.l.b16 %v170
    %v288 = vunpack.c.h.b16 %v170
    %v289 = vunpack.c.l.b16 %v171
    %v290 = vunpack.c.l.b16 %v172
    %v291 = vunpack.c.h.b16 %v172
    %v292 = vunpack.c.l.b16 %v173
    %v293 = vunpack.c.l.b16 %v174
    %v294 = vunpack.c.h.b16 %v174
    %v295 = vunpack.c.l.b16 %v175
    %v296 = vunpack.c.l.b16 %v176
    %v297 = vunpack.c.h.b16 %v176
    %v298 = vunpack.c.l.b16 %v177
    %v299 = vunpack.c.l.b16 %v178
    %v300 = vunpack.c.h.b16 %v178
    %v301 = vunpack.c.l.b16 %v179
    %v302 = vunpack.c.l.b16 %v180
    %v303 = vunpack.c.h.b16 %v180
    %v304 = vunpack.c.l.b16 %v181
    %v305 = vunpack.c.l.b16 %v182
    %v306 = vunpack.c.h.b16 %v182
    %v307 = vunpack.c.l.b16 %v183
    %v308 = vunpack.c.l.b16 %v184
    %v309 = vunpack.c.h.b16 %v184
    %v310 = vunpack.c.l.b16 %v185
    %v311 = vunpack.c.l.b16 %v186
    %v312 = vunpack.c.h.b16 %v186
    %v313 = vunpack.c.l.b16 %v187
    %v314 = vunpack.c.l.b16 %v188
    %v315 = vunpack.c.h.b16 %v188
    %v316 = vunpack.c.l.b16 %v189
    %v317 = vunpack.c.l.b16 %v190
    %v318 = vunpack.c.h.b16 %v190
    %v319 = vunpack.c.l.b16 %v191
    %v320 = vpack.c.b16 %v275, %v272
    %v321 = vpack.c.b16 %v276, %v273
    %v322 = vpack.c.b16 %v277, %v274
    %v323 = vpack.c.b16 %v281, %v278
    %v324 = vpack.c.b16 %v282, %v279
    %v325 = vpack.c.b16 %v283, %v280
    %v326 = vpack.c.b16 %v287, %v284
    %v327 = vpack.c.b16 %v288, %v285
    %v328 = vpack.c.b16 %v289, %v286
    %v329 = vpack.c.b16 %v293, %v290
    %v330 = vpack.c.b16 %v294, %v291
    %v331 = vpack.c.b16 %v295, %v292
    %v332 = vpack.c.b16 %v299, %v296
    %v333 = vpack.c.b16 %v300, %v297
    %v334 = vpack.c.b16 %v301, %v298
    %v335 = vpack.c.b16 %v305, %v302
    %v336 = vpack.c.b16 %v306, %v303
    %v337 = vpack.c.b16 %v307, %v304
    %v338 = vpack.c.b16 %v311, %v308
    %v339 = vpack.c.b16 %v312, %v309
    %v340 = vpack.c.b16 %v313, %v310
    %v341 = vpack.c.b16 %v317, %v314
    %v342 = vpack.c.b16 %v318, %v315
    %v343 = vpack.c.b16 %v319, %v316
    %368 = vmatpush.bf16.msra.mxu0 %v341
    %369 = vmatpush.bf16.msra.mxu0 %v338
    %370 = vmatpush.bf16.msra.mxu0 %v335
    %371 = vmatpush.bf16.msra.mxu0 %v332
    %372 = vmatpush.bf16.msra.mxu0 %v329
    %373 = vmatpush.bf16.msra.mxu0 %v326
    %374 = vmatpush.bf16.msra.mxu0 %v323
    %375 = vmatpush.bf16.msra.mxu0 %v320
    %376 = vmatmul.bf16.gmra.mxu0 %v224
    %v377 = vpop.f32.mrf.mxu0
    %v378 = vadd.f32 0.0, %v377
    %v379 = vpop.f32.mrf.mxu0
    %v380 = vadd.f32 0.0, %v379
    %381 = vmatmul.bf16.gmra.mxu0 %v225
    %v382 = vpop.f32.mrf.mxu0
    %v383 = vadd.f32 0.0, %v382
    %v384 = vpop.f32.mrf.mxu0
    %v385 = vadd.f32 0.0, %v384
    %386 = vmatmul.bf16.gmra.mxu0 %v226
    %v387 = vpop.f32.mrf.mxu0
    %v388 = vadd.f32 0.0, %v387
    %v389 = vpop.f32.mrf.mxu0
    %v390 = vadd.f32 0.0, %v389
    %391 = vmatmul.bf16.gmra.mxu0 %v227
    %v392 = vpop.f32.mrf.mxu0
    %v393 = vadd.f32 0.0, %v392
    %v394 = vpop.f32.mrf.mxu0
    %v395 = vadd.f32 0.0, %v394
    %396 = vmatmul.bf16.gmra.mxu0 %v228
    %v397 = vpop.f32.mrf.mxu0
    %v398 = vadd.f32 0.0, %v397
    %v399 = vpop.f32.mrf.mxu0
    %v400 = vadd.f32 0.0, %v399
    %401 = vmatmul.bf16.gmra.mxu0 %v229
    %v402 = vpop.f32.mrf.mxu0
    %v403 = vadd.f32 0.0, %v402
    %v404 = vpop.f32.mrf.mxu0
    %v405 = vadd.f32 0.0, %v404
    %406 = vmatmul.bf16.gmra.mxu0 %v230
    %v407 = vpop.f32.mrf.mxu0
    %v408 = vadd.f32 0.0, %v407
    %v409 = vpop.f32.mrf.mxu0
    %v410 = vadd.f32 0.0, %v409
    %411 = vmatmul.bf16.gmra.mxu0 %v231
    %v412 = vpop.f32.mrf.mxu0
    %v413 = vadd.f32 0.0, %v412
    %v414 = vpop.f32.mrf.mxu0
    %v415 = vadd.f32 0.0, %v414
    %416 = vdwg.mxu0
    %417 = vmatpush.bf16.msra.mxu0 %v342
    %418 = vmatpush.bf16.msra.mxu0 %v339
    %419 = vmatpush.bf16.msra.mxu0 %v336
    %420 = vmatpush.bf16.msra.mxu0 %v333
    %421 = vmatpush.bf16.msra.mxu0 %v330
    %422 = vmatpush.bf16.msra.mxu0 %v327
    %423 = vmatpush.bf16.msra.mxu0 %v324
    %424 = vmatpush.bf16.msra.mxu0 %v321
    %425 = vmatmul.bf16.gmra.mxu0 %v224
    %v426 = vpop.f32.mrf.mxu0
    %v427 = vadd.f32 0.0, %v426
    %v428 = vpop.f32.mrf.mxu0
    %v429 = vadd.f32 0.0, %v428
    %430 = vmatmul.bf16.gmra.mxu0 %v225
    %v431 = vpop.f32.mrf.mxu0
    %v432 = vadd.f32 0.0, %v431
    %v433 = vpop.f32.mrf.mxu0
    %v434 = vadd.f32 0.0, %v433
    %435 = vmatmul.bf16.gmra.mxu0 %v226
    %v436 = vpop.f32.mrf.mxu0
    %v437 = vadd.f32 0.0, %v436
    %v438 = vpop.f32.mrf.mxu0
    %v439 = vadd.f32 0.0, %v438
    %440 = vmatmul.bf16.gmra.mxu0 %v227
    %v441 = vpop.f32.mrf.mxu0
    %v442 = vadd.f32 0.0, %v441
    %v443 = vpop.f32.mrf.mxu0
    %v444 = vadd.f32 0.0, %v443
    %445 = vmatmul.bf16.gmra.mxu0 %v228
    %v446 = vpop.f32.mrf.mxu0
    %v447 = vadd.f32 0.0, %v446
    %v448 = vpop.f32.mrf.mxu0
    %v449 = vadd.f32 0.0, %v448
    %450 = vmatmul.bf16.gmra.mxu0 %v229
    %v451 = vpop.f32.mrf.mxu0
    %v452 = vadd.f32 0.0, %v451
    %v453 = vpop.f32.mrf.mxu0
    %v454 = vadd.f32 0.0, %v453
    %455 = vmatmul.bf16.gmra.mxu0 %v230
    %v456 = vpop.f32.mrf.mxu0
    %v457 = vadd.f32 0.0, %v456
    %v458 = vpop.f32.mrf.mxu0
    %v459 = vadd.f32 0.0, %v458
    %460 = vmatmul.bf16.gmra.mxu0 %v231
    %v461 = vpop.f32.mrf.mxu0
    %v462 = vadd.f32 0.0, %v461
    %v463 = vpop.f32.mrf.mxu0
    %v464 = vadd.f32 0.0, %v463
    %465 = vdwg.mxu0
    %466 = vmatpush.bf16.msra.mxu0 %v343
    %467 = vmatpush.bf16.msra.mxu0 %v340
    %468 = vmatpush.bf16.msra.mxu0 %v337
    %469 = vmatpush.bf16.msra.mxu0 %v334
    %470 = vmatpush.bf16.msra.mxu0 %v331
    %471 = vmatpush.bf16.msra.mxu0 %v328
    %472 = vmatpush.bf16.msra.mxu0 %v325
    %473 = vmatpush.bf16.msra.mxu0 %v322
    %474 = vmatmul.bf16.gmra.mxu0 %v224
    %v475 = vpop.f32.mrf.mxu0
    %v476 = vadd.f32 0.0, %v475
    %v477 = vpop.f32.mrf.mxu0
    %v478 = vadd.f32 0.0, %v477
    %479 = vmatmul.bf16.gmra.mxu0 %v225
    %v480 = vpop.f32.mrf.mxu0
    %v481 = vadd.f32 0.0, %v480
    %v482 = vpop.f32.mrf.mxu0
    %v483 = vadd.f32 0.0, %v482
    %484 = vmatmul.bf16.gmra.mxu0 %v226
    %v485 = vpop.f32.mrf.mxu0
    %v486 = vadd.f32 0.0, %v485
    %v487 = vpop.f32.mrf.mxu0
    %v488 = vadd.f32 0.0, %v487
    %489 = vmatmul.bf16.gmra.mxu0 %v227
    %v490 = vpop.f32.mrf.mxu0
    %v491 = vadd.f32 0.0, %v490
    %v492 = vpop.f32.mrf.mxu0
    %v493 = vadd.f32 0.0, %v492
    %494 = vmatmul.bf16.gmra.mxu0 %v228
    %v495 = vpop.f32.mrf.mxu0
    %v496 = vadd.f32 0.0, %v495
    %v497 = vpop.f32.mrf.mxu0
    %v498 = vadd.f32 0.0, %v497
    %499 = vmatmul.bf16.gmra.mxu0 %v229
    %v500 = vpop.f32.mrf.mxu0
    %v501 = vadd.f32 0.0, %v500
    %v502 = vpop.f32.mrf.mxu0
    %v503 = vadd.f32 0.0, %v502
    %504 = vmatmul.bf16.gmra.mxu0 %v230
    %v505 = vpop.f32.mrf.mxu0
    %v506 = vadd.f32 0.0, %v505
    %v507 = vpop.f32.mrf.mxu0
    %v508 = vadd.f32 0.0, %v507
    %509 = vmatmul.bf16.gmra.mxu0 %v231
    %v510 = vpop.f32.mrf.mxu0
    %v511 = vadd.f32 0.0, %v510
    %v512 = vpop.f32.mrf.mxu0
    %v513 = vadd.f32 0.0, %v512
    %514 = vdwg.mxu0
    %v515 = vadd.f32 %v96, %v378
    %v516 = vadd.f32 %v97, %v427
    %v517 = vadd.f32 %v98, %v476
    %v518 = vadd.f32 %v99, %v380
    %v519 = vadd.f32 %v100, %v429
    %v520 = vadd.f32 %v101, %v478
    %v521 = vadd.f32 %v102, %v383
    %v522 = vadd.f32 %v103, %v432
    %v523 = vadd.f32 %v104, %v481
    %v524 = vadd.f32 %v105, %v385
    %v525 = vadd.f32 %v106, %v434
    %v526 = vadd.f32 %v107, %v483
    %v527 = vadd.f32 %v108, %v388
    %v528 = vadd.f32 %v109, %v437
    %v529 = vadd.f32 %v110, %v486
    %v530 = vadd.f32 %v111, %v390
    %v531 = vadd.f32 %v112, %v439
    %v532 = vadd.f32 %v113, %v488
    %v533 = vadd.f32 %v114, %v393
    %v534 = vadd.f32 %v115, %v442
    %v535 = vadd.f32 %v116, %v491
    %v536 = vadd.f32 %v117, %v395
    %v537 = vadd.f32 %v118, %v444
    %v538 = vadd.f32 %v119, %v493
    %v539 = vadd.f32 %v120, %v398
    %v540 = vadd.f32 %v121, %v447
    %v541 = vadd.f32 %v122, %v496
    %v542 = vadd.f32 %v123, %v400
    %v543 = vadd.f32 %v124, %v449
    %v544 = vadd.f32 %v125, %v498
    %v545 = vadd.f32 %v126, %v403
    %v546 = vadd.f32 %v127, %v452
    %v547 = vadd.f32 %v128, %v501
    %v548 = vadd.f32 %v129, %v405
    %v549 = vadd.f32 %v130, %v454
    %v550 = vadd.f32 %v131, %v503
    %v551 = vadd.f32 %v132, %v408
    %v552 = vadd.f32 %v133, %v457
    %v553 = vadd.f32 %v134, %v506
    %v554 = vadd.f32 %v135, %v410
    %v555 = vadd.f32 %v136, %v459
    %v556 = vadd.f32 %v137, %v508
    %v557 = vadd.f32 %v138, %v413
    %v558 = vadd.f32 %v139, %v462
    %v559 = vadd.f32 %v140, %v511
    %v560 = vadd.f32 %v141, %v415
    %v561 = vadd.f32 %v142, %v464
    %v562 = vadd.f32 %v143, %v513
    %563 = vst [vmem:[#allocation2] sm:$0xff] %v515
    %564 = vst [vmem:[#allocation2 + $0x8] sm:$0xff] %v516
    %565 = vst [vmem:[#allocation2 + $0x10] sm:$0xff] %v517
    %566 = vst [vmem:[#allocation2 + $0x18] sm:$0xff] %v518
    %567 = vst [vmem:[#allocation2 + $0x20] sm:$0xff] %v519
    %568 = vst [vmem:[#allocation2 + $0x28] sm:$0xff] %v520
    %569 = vst [vmem:[#allocation2 + $0x30] sm:$0xff] %v521
    %570 = vst [vmem:[#allocation2 + $0x38] sm:$0xff] %v522
    %571 = vst [vmem:[#allocation2 + $0x40] sm:$0xff] %v523
    %572 = vst [vmem:[#allocation2 + $0x48] sm:$0xff] %v524
    %573 = vst [vmem:[#allocation2 + $0x50] sm:$0xff] %v525
    %574 = vst [vmem:[#allocation2 + $0x58] sm:$0xff] %v526
    %575 = vst [vmem:[#allocation2 + $0x60] sm:$0xff] %v527
    %576 = vst [vmem:[#allocation2 + $0x68] sm:$0xff] %v528
    %577 = vst [vmem:[#allocation2 + $0x70] sm:$0xff] %v529
    %578 = vst [vmem:[#allocation2 + $0x78] sm:$0xff] %v530
    %579 = vst [vmem:[#allocation2 + $0x80] sm:$0xff] %v531
    %580 = vst [vmem:[#allocation2 + $0x88] sm:$0xff] %v532
    %581 = vst [vmem:[#allocation2 + $0x90] sm:$0xff] %v533
    %582 = vst [vmem:[#allocation2 + $0x98] sm:$0xff] %v534
    %583 = vst [vmem:[#allocation2 + $0xa0] sm:$0xff] %v535
    %584 = vst [vmem:[#allocation2 + $0xa8] sm:$0xff] %v536
    %585 = vst [vmem:[#allocation2 + $0xb0] sm:$0xff] %v537
    %586 = vst [vmem:[#allocation2 + $0xb8] sm:$0xff] %v538
    %587 = vst [vmem:[#allocation2 + $0xc0] sm:$0xff] %v539
    %588 = vst [vmem:[#allocation2 + $0xc8] sm:$0xff] %v540
    %589 = vst [vmem:[#allocation2 + $0xd0] sm:$0xff] %v541
    %590 = vst [vmem:[#allocation2 + $0xd8] sm:$0xff] %v542
    %591 = vst [vmem:[#allocation2 + $0xe0] sm:$0xff] %v543
    %592 = vst [vmem:[#allocation2 + $0xe8] sm:$0xff] %v544
    %593 = vst [vmem:[#allocation2 + $0xf0] sm:$0xff] %v545
    %594 = vst [vmem:[#allocation2 + $0xf8] sm:$0xff] %v546
    %595 = vst [vmem:[#allocation2 + $0x100] sm:$0xff] %v547
    %596 = vst [vmem:[#allocation2 + $0x108] sm:$0xff] %v548
    %597 = vst [vmem:[#allocation2 + $0x110] sm:$0xff] %v549
    %598 = vst [vmem:[#allocation2 + $0x118] sm:$0xff] %v550
    %599 = vst [vmem:[#allocation2 + $0x120] sm:$0xff] %v551
    %600 = vst [vmem:[#allocation2 + $0x128] sm:$0xff] %v552
    %601 = vst [vmem:[#allocation2 + $0x130] sm:$0xff] %v553
    %602 = vst [vmem:[#allocation2 + $0x138] sm:$0xff] %v554
    %603 = vst [vmem:[#allocation2 + $0x140] sm:$0xff] %v555
    %604 = vst [vmem:[#allocation2 + $0x148] sm:$0xff] %v556
    %605 = vst [vmem:[#allocation2 + $0x150] sm:$0xff] %v557
    %606 = vst [vmem:[#allocation2 + $0x158] sm:$0xff] %v558
    %607 = vst [vmem:[#allocation2 + $0x160] sm:$0xff] %v559
    %608 = vst [vmem:[#allocation2 + $0x168] sm:$0xff] %v560
    %609 = vst [vmem:[#allocation2 + $0x170] sm:$0xff] %v561
    %610 = vst [vmem:[#allocation2 + $0x178] sm:$0xff] %v562
    // Predicated region
    $region22: #{tpu_custom_call.1} parent=1 // pred_check
      %p611 = pneg %p44
    $region23: #{tpu_custom_call.1} parent=1 // pred_check_branch
      %613 = sbr.rel (%p611) target = $region25
    $region24: #{tpu_custom_call.1} parent=1 // pred_region
      %v614 = vld [vmem:[#allocation2] sm:$0xff]
      %v615 = vld [vmem:[#allocation2 + $0x8] sm:$0xff]
      %v616 = vld [vmem:[#allocation2 + $0x10] sm:$0xff]
      %v617 = vld [vmem:[#allocation2 + $0x18] sm:$0xff]
      %v618 = vld [vmem:[#allocation2 + $0x20] sm:$0xff]
      %v619 = vld [vmem:[#allocation2 + $0x28] sm:$0xff]
      %v620 = vld [vmem:[#allocation2 + $0x30] sm:$0xff]
      %v621 = vld [vmem:[#allocation2 + $0x38] sm:$0xff]
      %v622 = vld [vmem:[#allocation2 + $0x40] sm:$0xff]
      %v623 = vld [vmem:[#allocation2 + $0x48] sm:$0xff]
      %v624 = vld [vmem:[#allocation2 + $0x50] sm:$0xff]
      %v625 = vld [vmem:[#allocation2 + $0x58] sm:$0xff]
      %v626 = vld [vmem:[#allocation2 + $0x60] sm:$0xff]
      %v627 = vld [vmem:[#allocation2 + $0x68] sm:$0xff]
      %v628 = vld [vmem:[#allocation2 + $0x70] sm:$0xff]
      %v629 = vld [vmem:[#allocation2 + $0x78] sm:$0xff]
      %v630 = vld [vmem:[#allocation2 + $0x80] sm:$0xff]
      %v631 = vld [vmem:[#allocation2 + $0x88] sm:$0xff]
      %v632 = vld [vmem:[#allocation2 + $0x90] sm:$0xff]
      %v633 = vld [vmem:[#allocation2 + $0x98] sm:$0xff]
      %v634 = vld [vmem:[#allocation2 + $0xa0] sm:$0xff]
      %v635 = vld [vmem:[#allocation2 + $0xa8] sm:$0xff]
      %v636 = vld [vmem:[#allocation2 + $0xb0] sm:$0xff]
      %v637 = vld [vmem:[#allocation2 + $0xb8] sm:$0xff]
      %v638 = vld [vmem:[#allocation2 + $0xc0] sm:$0xff]
      %v639 = vld [vmem:[#allocation2 + $0xc8] sm:$0xff]
      %v640 = vld [vmem:[#allocation2 + $0xd0] sm:$0xff]
      %v641 = vld [vmem:[#allocation2 + $0xd8] sm:$0xff]
      %v642 = vld [vmem:[#allocation2 + $0xe0] sm:$0xff]
      %v643 = vld [vmem:[#allocation2 + $0xe8] sm:$0xff]
      %v644 = vld [vmem:[#allocation2 + $0xf0] sm:$0xff]
      %v645 = vld [vmem:[#allocation2 + $0xf8] sm:$0xff]
      %v646 = vld [vmem:[#allocation2 + $0x100] sm:$0xff]
      %v647 = vld [vmem:[#allocation2 + $0x108] sm:$0xff]
      %v648 = vld [vmem:[#allocation2 + $0x110] sm:$0xff]
      %v649 = vld [vmem:[#allocation2 + $0x118] sm:$0xff]
      %v650 = vld [vmem:[#allocation2 + $0x120] sm:$0xff]
      %v651 = vld [vmem:[#allocation2 + $0x128] sm:$0xff]
      %v652 = vld [vmem:[#allocation2 + $0x130] sm:$0xff]
      %v653 = vld [vmem:[#allocation2 + $0x138] sm:$0xff]
      %v654 = vld [vmem:[#allocation2 + $0x140] sm:$0xff]
      %v655 = vld [vmem:[#allocation2 + $0x148] sm:$0xff]
      %v656 = vld [vmem:[#allocation2 + $0x150] sm:$0xff]
      %v657 = vld [vmem:[#allocation2 + $0x158] sm:$0xff]
      %v658 = vld [vmem:[#allocation2 + $0x160] sm:$0xff]
      %v659 = vld [vmem:[#allocation2 + $0x168] sm:$0xff]
      %v660 = vld [vmem:[#allocation2 + $0x170] sm:$0xff]
      %v661 = vld [vmem:[#allocation2 + $0x178] sm:$0xff]
      %v662 = vpack.c.bf16 %v615, %v614
      %v663 = vpack.c.bf16 %v616, %v616
      %v664 = vpack.c.bf16 %v618, %v617
      %v665 = vpack.c.bf16 %v619, %v619
      %v666 = vpack.c.bf16 %v621, %v620
      %v667 = vpack.c.bf16 %v622, %v622
      %v668 = vpack.c.bf16 %v624, %v623
      %v669 = vpack.c.bf16 %v625, %v625
      %v670 = vpack.c.bf16 %v627, %v626
      %v671 = vpack.c.bf16 %v628, %v628
      %v672 = vpack.c.bf16 %v630, %v629
      %v673 = vpack.c.bf16 %v631, %v631
      %v674 = vpack.c.bf16 %v633, %v632
      %v675 = vpack.c.bf16 %v634, %v634
      %v676 = vpack.c.bf16 %v636, %v635
      %v677 = vpack.c.bf16 %v637, %v637
      %v678 = vpack.c.bf16 %v639, %v638
      %v679 = vpack.c.bf16 %v640, %v640
      %v680 = vpack.c.bf16 %v642, %v641
      %v681 = vpack.c.bf16 %v643, %v643
      %v682 = vpack.c.bf16 %v645, %v644
      %v683 = vpack.c.bf16 %v646, %v646
      %v684 = vpack.c.bf16 %v648, %v647
      %v685 = vpack.c.bf16 %v649, %v649
      %v686 = vpack.c.bf16 %v651, %v650
      %v687 = vpack.c.bf16 %v652, %v652
      %v688 = vpack.c.bf16 %v654, %v653
      %v689 = vpack.c.bf16 %v655, %v655
      %v690 = vpack.c.bf16 %v657, %v656
      %v691 = vpack.c.bf16 %v658, %v658
      %v692 = vpack.c.bf16 %v660, %v659
      %v693 = vpack.c.bf16 %v661, %v661
      %694 = vst [vmem:[#allocation8] sm:$0xff] %v662
      %695 = vst [vmem:[#allocation8 + $0x8] sm:$0xf] %v663
      %696 = vst [vmem:[#allocation8 + $0xc] sm:$0xff] %v664
      %697 = vst [vmem:[#allocation8 + $0x14] sm:$0xf] %v665
      %698 = vst [vmem:[#allocation8 + $0x18] sm:$0xff] %v666
      %699 = vst [vmem:[#allocation8 + $0x20] sm:$0xf] %v667
      %700 = vst [vmem:[#allocation8 + $0x24] sm:$0xff] %v668
      %701 = vst [vmem:[#allocation8 + $0x2c] sm:$0xf] %v669
      %702 = vst [vmem:[#allocation8 + $0x30] sm:$0xff] %v670
      %703 = vst [vmem:[#allocation8 + $0x38] sm:$0xf] %v671
      %704 = vst [vmem:[#allocation8 + $0x3c] sm:$0xff] %v672
      %705 = vst [vmem:[#allocation8 + $0x44] sm:$0xf] %v673
      %706 = vst [vmem:[#allocation8 + $0x48] sm:$0xff] %v674
      %707 = vst [vmem:[#allocation8 + $0x50] sm:$0xf] %v675
      %708 = vst [vmem:[#allocation8 + $0x54] sm:$0xff] %v676
      %709 = vst [vmem:[#allocation8 + $0x5c] sm:$0xf] %v677
      %710 = vst [vmem:[#allocation8 + $0x60] sm:$0xff] %v678
      %711 = vst [vmem:[#allocation8 + $0x68] sm:$0xf] %v679
      %712 = vst [vmem:[#allocation8 + $0x6c] sm:$0xff] %v680
      %713 = vst [vmem:[#allocation8 + $0x74] sm:$0xf] %v681
      %714 = vst [vmem:[#allocation8 + $0x78] sm:$0xff] %v682
      %715 = vst [vmem:[#allocation8 + $0x80] sm:$0xf] %v683
      %716 = vst [vmem:[#allocation8 + $0x84] sm:$0xff] %v684
      %717 = vst [vmem:[#allocation8 + $0x8c] sm:$0xf] %v685
      %718 = vst [vmem:[#allocation8 + $0x90] sm:$0xff] %v686
      %719 = vst [vmem:[#allocation8 + $0x98] sm:$0xf] %v687
      %720 = vst [vmem:[#allocation8 + $0x9c] sm:$0xff] %v688
      %721 = vst [vmem:[#allocation8 + $0xa4] sm:$0xf] %v689
      %722 = vst [vmem:[#allocation8 + $0xa8] sm:$0xff] %v690
      %723 = vst [vmem:[#allocation8 + $0xb0] sm:$0xf] %v691
      %724 = vst [vmem:[#allocation8 + $0xb4] sm:$0xff] %v692
      %725 = vst [vmem:[#allocation8 + $0xbc] sm:$0xf] %v693
    $region25: #{tpu_custom_call.1} parent=1 // pred_fallthru
      _
    // Predicated region
    $region26: #{tpu_custom_call.1} parent=1 // pred_check
      _
    $region27: #{tpu_custom_call.1} parent=1 // pred_check_branch
      %727 = sbr.rel (0) target = $region29
    $region28: #{tpu_custom_call.1} parent=1 // pred_region
      %729 = vsyncadd [#allocation5], 0
      %s730 = sshll.u32 [#allocation8], 4
      %s731 = int_to_ptr.vmem [resolvable:$true] %s730
      %s732 = sshll.u32 %s2, 4
      %s733 = int_to_ptr.hbm [resolvable:$true] %s732
      %738 = dma.vmem_to_hbm [thread:$0]  %s731, 3072, %s733, [#allocation5], 192, 192, 12
    $region29: #{tpu_custom_call.1} parent=1 // pred_fallthru
      _
    // Predicated region
    $region30: #{tpu_custom_call.1} parent=1 // pred_check
      _
    $region31: #{tpu_custom_call.1} parent=1 // pred_check_branch
      %740 = sbr.rel (0) target = $region33
    $region32: #{tpu_custom_call.1} parent=1 // pred_region
      %742 = dma.done [#allocation5], 3072
    $region33: #{tpu_custom_call.1} parent=1 // pred_fallthru
      _
    %743 = vsyncpa [#allocation4], 1
    %744 = vsyncpa [#allocation7], 1
    %745 = vsyncpa [#allocation5], 1

</llo_original>
